<compile_context>
chip_gen: v6e
topology: v6e:2x2x1
jax: 0.10.0
libtpu: 0.0.40
codegen_flags: <defaults>
</compile_context>

<pallas_src>
import functools

import jax
import jax.numpy as jnp
from jax.experimental import pallas as pl
from jax.experimental.pallas import tpu as pltpu


def shield_kernel(x_ref, w0_ref, w12_ref, tail_ref, out_ref):
    """Full Shield MLP forward for one batch tile, entirely in VMEM.

    x_ref   : (tile, in_dim)      bf16 input rows
    w0_ref  : (in_dim, H)         bf16, first Linear weight
    w12_ref : (2, H, H)           bf16, hidden Linear weights (W1, W2)
    tail_ref: (5, H)              f32: row0=b0, row1=b1, row2=b2, row3=w3 (head
                                  weight as a row), row4[0]=b3 (head bias)
    out_ref : (1, tile)           f32 sigmoid outputs, lane-dense
    """
    x = x_ref[...]                      # bf16 (tile, in_dim)
    w0 = w0_ref[...]                    # bf16 (in_dim, H)
    w1 = w12_ref[0]                     # bf16 (H, H)
    w2 = w12_ref[1]                     # bf16 (H, H)
    tail = tail_ref[...]                # f32  (5, H)
    b0 = tail[0:1, :]
    b1 = tail[1:2, :]
    b2 = tail[2:3, :]
    w3t = tail[3:4, :]                  # (1, H)
    b3 = tail[4:5, 0:1]                 # (1, 1)

    # Linear(input -> hidden), no activation (matches nn.Sequential construction).
    h = jnp.dot(x, w0, preferred_element_type=jnp.float32) + b0
    # Hidden block 1: Linear(hidden -> hidden) + ReLU   (bf16 MXU, f32 accumulate)
    h = jnp.maximum(
        jnp.dot(h.astype(jnp.bfloat16), w1, preferred_element_type=jnp.float32) + b1,
        0.0)
    # Hidden block 2: Linear(hidden -> hidden) + ReLU
    h = jnp.maximum(
        jnp.dot(h.astype(jnp.bfloat16), w2, preferred_element_type=jnp.float32) + b2,
        0.0)

    # Output head computed transposed: (1, H) contracted with (tile, H) -> (1, tile),
    # so the final store is a full-lane-width (lane-dense) vst.
    logits = jax.lax.dot_general(
        w3t, h, (((1,), (1,)), ((), ())),
        preferred_element_type=jnp.float32) + b3
    out_ref[...] = jax.nn.sigmoid(logits).astype(out_ref.dtype)


def pack_params(params):
    """Pack Linear weights/biases ONCE (call outside the hot forward path).

    Returns:
      w0_bf16  : (in_dim, H)  bf16
      w12_bf16 : (2, H, H)    bf16
      tail_f32 : (5, H)       f32  (b0, b1, b2, w3-row, b3 at [4,0])
    """
    (w0, b0), (w1, b1), (w2, b2), (w3, b3) = params
    _, hidden = w0.shape
    w0_bf = w0.astype(jnp.bfloat16)
    w12_bf = jnp.stack([w1, w2], axis=0).astype(jnp.bfloat16)
    tail = jnp.zeros((5, hidden), jnp.float32)
    tail = tail.at[0, :].set(b0.reshape(-1))
    tail = tail.at[1, :].set(b1.reshape(-1))
    tail = tail.at[2, :].set(b2.reshape(-1))
    tail = tail.at[3, :].set(w3.reshape(-1))
    tail = tail.at[4, 0].set(jnp.reshape(b3, ()))
    return w0_bf, w12_bf, tail


def _round_up(x, m):
    return ((x + m - 1) // m) * m


def _choose_tiling(batch):
    """Right-size the batch tile.

    Small batches (<=512 padded rows): one tile of round_up(B, 16) -> no extra grid
    step, minimal pad waste.  Large batches: an EVEN number of lane-dense
    (multiple-of-128) tiles so both v7x TensorCores get balanced work.
    """
    b_pad = _round_up(batch, 16)                 # bf16 sublane-pack friendly
    if b_pad <= 512:
        return b_pad, b_pad, 1
    num_tiles = pl.cdiv(b_pad, 512)
    if num_tiles % 2:
        num_tiles += 1
    tile = _round_up(pl.cdiv(b_pad, num_tiles), 128)
    b_pad = tile * num_tiles
    return b_pad, tile, num_tiles


@jax.jit
def _shield_forward_packed(x, w0_bf, w12_bf, tail_f32):
    """Jitted forward: pad + pallas_call + slice fuse into one dispatch."""
    B, in_dim = x.shape
    hidden = w0_bf.shape[1]
    b_pad, tile, num_tiles = _choose_tiling(B)

    x_bf = x.astype(jnp.bfloat16)
    if b_pad != B:
        x_bf = jnp.pad(x_bf, ((0, b_pad - B), (0, 0)))

    out = pl.pallas_call(
        shield_kernel,
        out_shape=jax.ShapeDtypeStruct((1, b_pad), jnp.float32),
        grid=(num_tiles,),
        in_specs=[
            pl.BlockSpec((tile, in_dim), lambda i: (i, 0)),          # x tile (bf16)
            pl.BlockSpec((in_dim, hidden), lambda i: (0, 0)),        # W0 (full array)
            pl.BlockSpec((2, hidden, hidden), lambda i: (0, 0, 0)),  # W1, W2
            pl.BlockSpec((5, hidden), lambda i: (0, 0)),             # biases + head
        ],
        out_specs=pl.BlockSpec((1, tile), lambda i: (0, i)),         # lane-dense
        compiler_params=pltpu.CompilerParams(
            dimension_semantics=("parallel",)),
    )(x_bf, w0_bf, w12_bf, tail_f32)

    # Back to the PyTorch output layout (B, 1), dropping batch padding.
    # NOTE: out[0, B:] holds sigmoid(bias-path) junk from pad rows; never reuse it.
    return out[0, :B][:, None]


def shield_forward(x, packed_params):
    """Forward with pre-packed params (pack_params() hoisted to setup time)."""
    w0_bf, w12_bf, tail_f32 = packed_params
    return _shield_forward_packed(x, w0_bf, w12_bf, tail_f32)


def init_params(key, input_size, hidden_dim):
    """Deterministic init mimicking PyTorch Linear default U(-1/sqrt(in), 1/sqrt(in)).

    Weights stored as (in, out); biases as (1, out)."""
    dims = [(input_size, hidden_dim),
            (hidden_dim, hidden_dim),
            (hidden_dim, hidden_dim),
            (hidden_dim, 1)]
    params = []
    for (fan_in, fan_out) in dims:
        key, kw, kb = jax.random.split(key, 3)
        bound = 1.0 / (fan_in ** 0.5)
        w = jax.random.uniform(kw, (fan_in, fan_out), jnp.float32, -bound, bound)
        b = jax.random.uniform(kb, (1, fan_out), jnp.float32, -bound, bound)
        params.append((w, b))
    return params


def shield_forward_ref(x, params):
    """Pure-JAX f32 reference for correctness check."""
    (w0, b0), (w1, b1), (w2, b2), (w3, b3) = params
    h = x @ w0 + b0
    h = jnp.maximum(h @ w1 + b1, 0.0)
    h = jnp.maximum(h @ w2 + b2, 0.0)
    return jax.nn.sigmoid(h @ w3 + b3)


if __name__ == "__main__":
    # Synthetic Shield config
    INPUT_SIZE = 20   # e.g. state dim 19 + action dim 1 (prepare_shield_input concat)
    HIDDEN_DIM = 32
    BATCH = 300       # NOT a multiple of 16 -> exercises pad; single-tile path

    key = jax.random.PRNGKey(0)
    key, kx, kx2 = jax.random.split(key, 3)
    params = init_params(key, INPUT_SIZE, HIDDEN_DIM)

    # Pack ONCE, outside the forward hot path.
    packed = pack_params(params)

    # x emulates torch.stack of prepare_shield_input(state, action) vectors.
    x = jax.random.normal(kx, (BATCH, INPUT_SIZE), jnp.float32)

    out = shield_forward(x, packed)
    out = jax.block_until_ready(out)

    ref = shield_forward_ref(x, params)
    assert out.shape == (BATCH, 1)
    # bf16 MXU inputs with f32 accumulation -> relaxed tolerance vs f32 reference.
    assert jnp.allclose(out, ref, atol=2e-2, rtol=2e-2), "mismatch vs reference (B=300)"

    # Larger batch exercises the multi-tile, megacore-parallel path.
    BATCH2 = 1200
    x2 = jax.random.normal(kx2, (BATCH2, INPUT_SIZE), jnp.float32)
    out2 = jax.block_until_ready(shield_forward(x2, packed))
    ref2 = shield_forward_ref(x2, params)
    assert out2.shape == (BATCH2, 1)
    assert jnp.allclose(out2, ref2, atol=2e-2, rtol=2e-2), "mismatch vs reference (B=1200)"

    # TODO(synk): ReplayBuffer / TrajectoryDataset / Adam update() / prepare_shield_input
    # are host-side training/data logic with no Pallas equivalent; only forward() is here.
    print("KERNEL_OK")
</pallas_src>

<mosaic_0001>
module attributes {stable_mosaic.version = 11 : i64} {
  func.func @shield_kernel(%arg0: i32, %arg1: memref<304x20xbf16, #tpu.memory_space<vmem>>, %arg2: memref<20x32xbf16, #tpu.memory_space<vmem>>, %arg3: memref<2x32x32xbf16, #tpu.memory_space<vmem>>, %arg4: memref<5x32xf32, #tpu.memory_space<vmem>>, %arg5: memref<1x304xf32, #tpu.memory_space<vmem>>) attributes {dimension_semantics = [#tpu.dimension_semantics<parallel>], iteration_bounds = array<i64: 1>, scalar_prefetch = 0 : i64, scratch_operands = 0 : i64, tpu.core_type = #tpu.core_type<tc>, window_params = [{transform_indices = @transform_0, window_bounds = array<i64: 304, 20>}, {pipeline_mode = #tpu.pipeline_mode<synchronous>, transform_indices = @transform_1, window_bounds = array<i64: 20, 32>}, {pipeline_mode = #tpu.pipeline_mode<synchronous>, transform_indices = @transform_2, window_bounds = array<i64: 2, 32, 32>}, {pipeline_mode = #tpu.pipeline_mode<synchronous>, transform_indices = @transform_3, window_bounds = array<i64: 5, 32>}, {transform_indices = @transform_4, window_bounds = array<i64: 1, 304>}]} {
    %c0 = arith.constant 0 : index
    %c0_0 = arith.constant 0 : index
    %0 = vector.load %arg1[%c0, %c0_0] : memref<304x20xbf16, #tpu.memory_space<vmem>>, vector<304x20xbf16>
    %c0_1 = arith.constant 0 : index
    %c0_2 = arith.constant 0 : index
    %1 = vector.load %arg2[%c0_1, %c0_2] : memref<20x32xbf16, #tpu.memory_space<vmem>>, vector<20x32xbf16>
    %c0_3 = arith.constant 0 : index
    %c0_4 = arith.constant 0 : index
    %c0_5 = arith.constant 0 : index
    %2 = vector.load %arg3[%c0_3, %c0_4, %c0_5] : memref<2x32x32xbf16, #tpu.memory_space<vmem>>, vector<1x32x32xbf16>
    %3 = vector.shape_cast %2 : vector<1x32x32xbf16> to vector<32x32xbf16>
    %c1 = arith.constant 1 : index
    %c0_6 = arith.constant 0 : index
    %c0_7 = arith.constant 0 : index
    %4 = vector.load %arg3[%c1, %c0_6, %c0_7] : memref<2x32x32xbf16, #tpu.memory_space<vmem>>, vector<1x32x32xbf16>
    %5 = vector.shape_cast %4 : vector<1x32x32xbf16> to vector<32x32xbf16>
    %c0_8 = arith.constant 0 : index
    %c0_9 = arith.constant 0 : index
    %6 = vector.load %arg4[%c0_8, %c0_9] : memref<5x32xf32, #tpu.memory_space<vmem>>, vector<5x32xf32>
    %7 = vector.extract_strided_slice %6 {offsets = [0, 0], sizes = [1, 32], strides = [1, 1]} : vector<5x32xf32> to vector<1x32xf32>
    %8 = vector.extract_strided_slice %6 {offsets = [1, 0], sizes = [1, 32], strides = [1, 1]} : vector<5x32xf32> to vector<1x32xf32>
    %9 = vector.extract_strided_slice %6 {offsets = [2, 0], sizes = [1, 32], strides = [1, 1]} : vector<5x32xf32> to vector<1x32xf32>
    %10 = vector.extract_strided_slice %6 {offsets = [3, 0], sizes = [1, 32], strides = [1, 1]} : vector<5x32xf32> to vector<1x32xf32>
    %11 = vector.extract_strided_slice %6 {offsets = [4, 0], sizes = [1, 1], strides = [1, 1]} : vector<5x32xf32> to vector<1x1xf32>
    %cst = arith.constant dense<0.000000e+00> : vector<304x32xf32>
    %12 = tpu.matmul %0, %1, %cst {dimension_numbers = #tpu.dot_dimension_numbers<[1], [0], [0], [1], [0, 0, 1, 1], [], []>} : vector<304x20xbf16>, vector<20x32xbf16>, vector<304x32xf32> -> vector<304x32xf32>
    %13 = vector.broadcast %7 : vector<1x32xf32> to vector<304x32xf32>
    %14 = arith.addf %12, %13 : vector<304x32xf32>
    %15 = arith.truncf %14 : vector<304x32xf32> to vector<304x32xbf16>
    %cst_10 = arith.constant dense<0.000000e+00> : vector<304x32xf32>
    %16 = tpu.matmul %15, %3, %cst_10 {dimension_numbers = #tpu.dot_dimension_numbers<[1], [0], [0], [1], [0, 0, 1, 1], [], []>} : vector<304x32xbf16>, vector<32x32xbf16>, vector<304x32xf32> -> vector<304x32xf32>
    %17 = vector.broadcast %8 : vector<1x32xf32> to vector<304x32xf32>
    %18 = arith.addf %16, %17 : vector<304x32xf32>
    %cst_11 = arith.constant 0.000000e+00 : f32
    %19 = vector.broadcast %cst_11 : f32 to vector<304x32xf32>
    %20 = arith.maximumf %18, %19 : vector<304x32xf32>
    %21 = arith.truncf %20 : vector<304x32xf32> to vector<304x32xbf16>
    %cst_12 = arith.constant dense<0.000000e+00> : vector<304x32xf32>
    %22 = tpu.matmul %21, %5, %cst_12 {dimension_numbers = #tpu.dot_dimension_numbers<[1], [0], [0], [1], [0, 0, 1, 1], [], []>} : vector<304x32xbf16>, vector<32x32xbf16>, vector<304x32xf32> -> vector<304x32xf32>
    %23 = vector.broadcast %9 : vector<1x32xf32> to vector<304x32xf32>
    %24 = arith.addf %22, %23 : vector<304x32xf32>
    %cst_13 = arith.constant 0.000000e+00 : f32
    %25 = vector.broadcast %cst_13 : f32 to vector<304x32xf32>
    %26 = arith.maximumf %24, %25 : vector<304x32xf32>
    %cst_14 = arith.constant dense<0.000000e+00> : vector<1x304xf32>
    %27 = tpu.matmul %10, %26, %cst_14 {dimension_numbers = #tpu.dot_dimension_numbers<[1], [1], [0], [0], [0, 0, 1, 0], [], []>} : vector<1x32xf32>, vector<304x32xf32>, vector<1x304xf32> -> vector<1x304xf32>
    %28 = vector.broadcast %11 : vector<1x1xf32> to vector<1x304xf32>
    %29 = arith.addf %27, %28 : vector<1x304xf32>
    %30 = arith.negf %29 : vector<1x304xf32>
    %31 = math.exp %30 : vector<1x304xf32>
    %cst_15 = arith.constant 1.000000e+00 : f32
    %32 = vector.broadcast %cst_15 : f32 to vector<1x304xf32>
    %33 = arith.addf %32, %31 : vector<1x304xf32>
    %34 = arith.divf %32, %33 : vector<1x304xf32>
    %c0_16 = arith.constant 0 : index
    %c0_17 = arith.constant 0 : index
    %35 = vector.load %arg5[%c0_16, %c0_17] : memref<1x304xf32, #tpu.memory_space<vmem>>, vector<1x304xf32>
    tpu.vector_store %arg5[%c0_16, %c0_17], %34 {strides = array<i32>} : memref<1x304xf32, #tpu.memory_space<vmem>>, vector<1x304xf32>,
    return
  }
  func.func @transform_0(%arg0: i32) -> (i32, i32) {
    %c0_i32 = arith.constant 0 : i32
    %c0_i32_0 = arith.constant 0 : i32
    return %arg0, %c0_i32 : i32, i32
  }
  func.func @transform_1(%arg0: i32) -> (i32, i32) {
    %c0_i32 = arith.constant 0 : i32
    %c0_i32_0 = arith.constant 0 : i32
    %c0_i32_1 = arith.constant 0 : i32
    return %c0_i32, %c0_i32_0 : i32, i32
  }
  func.func @transform_2(%arg0: i32) -> (i32, i32, i32) {
    %c0_i32 = arith.constant 0 : i32
    %c0_i32_0 = arith.constant 0 : i32
    %c0_i32_1 = arith.constant 0 : i32
    %c0_i32_2 = arith.constant 0 : i32
    return %c0_i32, %c0_i32_0, %c0_i32_1 : i32, i32, i32
  }
  func.func @transform_3(%arg0: i32) -> (i32, i32) {
    %c0_i32 = arith.constant 0 : i32
    %c0_i32_0 = arith.constant 0 : i32
    %c0_i32_1 = arith.constant 0 : i32
    return %c0_i32, %c0_i32_0 : i32, i32
  }
  func.func @transform_4(%arg0: i32) -> (i32, i32) {
    %c0_i32 = arith.constant 0 : i32
    %c0_i32_0 = arith.constant 0 : i32
    return %c0_i32, %arg0 : i32, i32
  }
}

</mosaic_0001>

<llo_original>
// kernel: _shield_forward_packed.1
$region0: #{_shield_forward_packed.1}
  #allocation0 [shape = 'u32[]', space=smem, size = 0x4, offset = 0x4, fixed_abs, tag = 'smem constant byte address 0x4 - core index']
  #allocation1 [shape = 'u32[144,128]{1,0:T(1,128)}', space=vmem, size = 0x12000, scoped, tag = 'internal scratch']
  %s0 = inlined_call_operand.vmem [shape: bf16[304,20], index: 0, kind: input, shape index: {}]
  %s1 = inlined_call_operand.vmem [shape: bf16[20,32], index: 1, kind: input, shape index: {}]
  %s2 = inlined_call_operand.vmem [shape: bf16[2,32,32], index: 2, kind: input, shape index: {}]
  %s3 = inlined_call_operand.vmem [shape: f32[5,32], index: 3, kind: input, shape index: {}]
  %s4 = inlined_call_operand.vmem [shape: f32[1,304], index: 4, kind: output, shape index: {}]
  %s5 = sld [smem:[#allocation0]]
  $region26: #{_shield_forward_packed.1} parent=0
    _
  %s7 = ssub.s32 1, %s5
  %s8 = scalar_select 0, %s7, %s5
  // Predicated region
  $region2: #{_shield_forward_packed.1} parent=0 // pred_check
    _
  $region3: #{_shield_forward_packed.1} parent=0 // pred_check_branch
    %10 = sbr.rel (0) target = $region5
  $region4: #{_shield_forward_packed.1} parent=0 // pred_region
    _
  $region5: #{_shield_forward_packed.1} parent=0 // pred_fallthru
    _
  // Predicated region
  $region6: #{_shield_forward_packed.1} parent=0 // pred_check
    _
  $region7: #{_shield_forward_packed.1} parent=0 // pred_check_branch
    %12 = sbr.rel (0) target = $region9
  $region8: #{_shield_forward_packed.1} parent=0 // pred_region
    _
  $region9: #{_shield_forward_packed.1} parent=0 // pred_fallthru
    _
  // Predicated region
  $region10: #{_shield_forward_packed.1} parent=0 // pred_check
    _
  $region11: #{_shield_forward_packed.1} parent=0 // pred_check_branch
    %14 = sbr.rel (0) target = $region13
  $region12: #{_shield_forward_packed.1} parent=0 // pred_region
    _
  $region13: #{_shield_forward_packed.1} parent=0 // pred_fallthru
    _
  // Predicated region
  $region14: #{_shield_forward_packed.1} parent=0 // pred_check
    _
  $region15: #{_shield_forward_packed.1} parent=0 // pred_check_branch
    %16 = sbr.rel (0) target = $region17
  $region16: #{_shield_forward_packed.1} parent=0 // pred_region
    _
  $region17: #{_shield_forward_packed.1} parent=0 // pred_fallthru
    _
  %v18 = vld [vmem:[%s0] sm:$0xf]
  %v19 = vld [vmem:[%s0 + $0x4] sm:$0xf]
  %v20 = vld [vmem:[%s0 + $0x8] sm:$0xf]
  %v21 = vld [vmem:[%s0 + $0xc] sm:$0xf]
  %v22 = vld [vmem:[%s0 + $0x10] sm:$0xf]
  %v23 = vld [vmem:[%s0 + $0x14] sm:$0xf]
  %v24 = vld [vmem:[%s0 + $0x18] sm:$0xf]
  %v25 = vld [vmem:[%s0 + $0x1c] sm:$0xf]
  %v26 = vld [vmem:[%s0 + $0x20] sm:$0xf]
  %v27 = vld [vmem:[%s0 + $0x24] sm:$0xf]
  %v28 = vld [vmem:[%s0 + $0x28] sm:$0xf]
  %v29 = vld [vmem:[%s0 + $0x2c] sm:$0xf]
  %v30 = vld [vmem:[%s0 + $0x30] sm:$0xf]
  %v31 = vld [vmem:[%s0 + $0x34] sm:$0xf]
  %v32 = vld [vmem:[%s0 + $0x38] sm:$0xf]
  %v33 = vld [vmem:[%s0 + $0x3c] sm:$0xf]
  %v34 = vld [vmem:[%s0 + $0x40] sm:$0xf]
  %v35 = vld [vmem:[%s0 + $0x44] sm:$0xf]
  %v36 = vld [vmem:[%s0 + $0x48] sm:$0xf]
  %v37 = vld [vmem:[%s0 + $0x4c] sm:$0xf]
  %v38 = vld [vmem:[%s0 + $0x50] sm:$0xf]
  %v39 = vld [vmem:[%s0 + $0x54] sm:$0xf]
  %v40 = vld [vmem:[%s0 + $0x58] sm:$0xf]
  %v41 = vld [vmem:[%s0 + $0x5c] sm:$0xf]
  %v42 = vld [vmem:[%s0 + $0x60] sm:$0xf]
  %v43 = vld [vmem:[%s0 + $0x64] sm:$0xf]
  %v44 = vld [vmem:[%s0 + $0x68] sm:$0xf]
  %v45 = vld [vmem:[%s0 + $0x6c] sm:$0xf]
  %v46 = vld [vmem:[%s0 + $0x70] sm:$0xf]
  %v47 = vld [vmem:[%s0 + $0x74] sm:$0xf]
  %v48 = vld [vmem:[%s0 + $0x78] sm:$0xf]
  %v49 = vld [vmem:[%s0 + $0x7c] sm:$0xf]
  %v50 = vld [vmem:[%s0 + $0x80] sm:$0xf]
  %v51 = vld [vmem:[%s0 + $0x84] sm:$0xf]
  %v52 = vld [vmem:[%s0 + $0x88] sm:$0xf]
  %v53 = vld [vmem:[%s0 + $0x8c] sm:$0xf]
  %v54 = vld [vmem:[%s0 + $0x90] sm:$0xf]
  %v55 = vld [vmem:[%s0 + $0x94] sm:$0xf]
  %v56 = vld [vmem:[%s1] sm:$0xf]
  %v57 = vld [vmem:[%s1 + $0x4] sm:$0xf]
  %v58 = vld [vmem:[%s1 + $0x8] sm:$0x3]
  %v59 = vld [vmem:[%s2] sm:$0xf]
  %v60 = vld [vmem:[%s2 + $0x4] sm:$0xf]
  %v61 = vld [vmem:[%s2 + $0x8] sm:$0xf]
  %v62 = vld [vmem:[%s2 + $0xc] sm:$0xf]
  %s63 = scalar_lea.vmem %s2, 16
  %v64 = vld [vmem:[%s63] sm:$0xf]
  %v65 = vld [vmem:[%s63 + $0x4] sm:$0xf]
  %v66 = vld [vmem:[%s63 + $0x8] sm:$0xf]
  %v67 = vld [vmem:[%s63 + $0xc] sm:$0xf]
  %v68 = vld [vmem:[%s3] sm:$0x1f]
  %v69 = vlaneseq
  %v70 = vshrl.u32 %v69, 7
  %v71 = vsub.s32 0, %v70
  %v72 = vrot.slane %v68, %v71
  %v111 = vunpack.c.l.b16 %v18
  %v112 = vunpack.c.l.b16 %v19
  %v113 = vunpack.c.l.b16 %v20
  %v114 = vunpack.c.l.b16 %v21
  %v115 = vunpack.c.l.b16 %v22
  %v116 = vunpack.c.l.b16 %v23
  %v117 = vunpack.c.l.b16 %v24
  %v118 = vunpack.c.l.b16 %v25
  %v119 = vunpack.c.l.b16 %v26
  %v120 = vunpack.c.l.b16 %v27
  %v121 = vunpack.c.l.b16 %v28
  %v122 = vunpack.c.l.b16 %v29
  %v123 = vunpack.c.l.b16 %v30
  %v124 = vunpack.c.l.b16 %v31
  %v125 = vunpack.c.l.b16 %v32
  %v126 = vunpack.c.l.b16 %v33
  %v127 = vunpack.c.l.b16 %v34
  %v128 = vunpack.c.l.b16 %v35
  %v129 = vunpack.c.l.b16 %v36
  %v130 = vunpack.c.l.b16 %v37
  %v131 = vunpack.c.l.b16 %v38
  %v132 = vunpack.c.l.b16 %v39
  %v133 = vunpack.c.l.b16 %v40
  %v134 = vunpack.c.l.b16 %v41
  %v135 = vunpack.c.l.b16 %v42
  %v136 = vunpack.c.l.b16 %v43
  %v137 = vunpack.c.l.b16 %v44
  %v138 = vunpack.c.l.b16 %v45
  %v139 = vunpack.c.l.b16 %v46
  %v140 = vunpack.c.l.b16 %v47
  %v141 = vunpack.c.l.b16 %v48
  %v142 = vunpack.c.l.b16 %v49
  %v143 = vunpack.c.l.b16 %v50
  %v144 = vunpack.c.l.b16 %v51
  %v145 = vunpack.c.l.b16 %v52
  %v146 = vunpack.c.l.b16 %v53
  %v147 = vunpack.c.l.b16 %v54
  %v148 = vunpack.c.l.b16 %v55
  %v149 = vpack.c.b16 %v112, %v111
  %v150 = vpack.c.b16 %v114, %v113
  %v151 = vpack.c.b16 %v116, %v115
  %v152 = vpack.c.b16 %v118, %v117
  %v153 = vpack.c.b16 %v120, %v119
  %v154 = vpack.c.b16 %v122, %v121
  %v155 = vpack.c.b16 %v124, %v123
  %v156 = vpack.c.b16 %v126, %v125
  %v157 = vpack.c.b16 %v128, %v127
  %v158 = vpack.c.b16 %v130, %v129
  %v159 = vpack.c.b16 %v132, %v131
  %v160 = vpack.c.b16 %v134, %v133
  %v161 = vpack.c.b16 %v136, %v135
  %v162 = vpack.c.b16 %v138, %v137
  %v163 = vpack.c.b16 %v140, %v139
  %v164 = vpack.c.b16 %v142, %v141
  %v165 = vpack.c.b16 %v144, %v143
  %v166 = vpack.c.b16 %v146, %v145
  %v167 = vpack.c.b16 %v148, %v147
  %v171 = vunpack.c.l.b16 %v56
  %v172 = vunpack.c.l.b16 %v57
  %v173 = vunpack.c.l.b16 %v58
  %v174 = vpack.c.b16 %v172, %v171
  %v175 = vpack.c.b16 %v173, %v173
  %vm177 = vcmask 162816
  %v179 = vsel %vm177, %v149, 0
  %v182 = vsel %vm177, %v150, 0
  %v185 = vsel %vm177, %v151, 0
  %v188 = vsel %vm177, %v152, 0
  %v191 = vsel %vm177, %v153, 0
  %v194 = vsel %vm177, %v154, 0
  %v197 = vsel %vm177, %v155, 0
  %v200 = vsel %vm177, %v156, 0
  %v203 = vsel %vm177, %v157, 0
  %v206 = vsel %vm177, %v158, 0
  %v209 = vsel %vm177, %v159, 0
  %v212 = vsel %vm177, %v160, 0
  %v215 = vsel %vm177, %v161, 0
  %v218 = vsel %vm177, %v162, 0
  %v221 = vsel %vm177, %v163, 0
  %v224 = vsel %vm177, %v164, 0
  %v227 = vsel %vm177, %v165, 0
  %v230 = vsel %vm177, %v166, 0
  %v233 = vsel %vm177, %v167, 0
  %vm235 = vcmask 1041408
  %v237 = vsel %vm235, %v175, 0
  %239 = vmatprep.subr.bf16.mxu0 0
  %240 = vmatpush1.bf16.msra.mxu0 0
  %241 = vmatprep.subr.bf16.mxu0 0
  %242 = vmatpush1.bf16.msra.mxu0 0
  %243 = vmatprep.subr.bf16.mxu0 0
  %244 = vmatpush1.bf16.msra.mxu0 0
  %245 = vmatprep.subr.bf16.mxu0 0
  %246 = vmatpush1.bf16.msra.mxu0 0
  %247 = vmatprep.subr.bf16.mxu0 0
  %248 = vmatpush1.bf16.msra.mxu0 0
  %249 = vmatprep.subr.bf16.mxu0 0
  %250 = vmatpush1.bf16.msra.mxu0 0
  %251 = vmatprep.subr.bf16.mxu0 0
  %252 = vmatpush1.bf16.msra.mxu0 %v237
  %253 = vmatprep.subr.bf16.mxu0 0
  %254 = vmatpush1.bf16.msra.mxu0 %v174
  %255 = vmatprep.subr.bf16.mxu0 0
  %256 = vmatpush2.bf16.msra.mxu0 0
  %257 = vmatprep.subr.bf16.mxu0 0
  %258 = vmatpush2.bf16.msra.mxu0 0
  %259 = vmatprep.subr.bf16.mxu0 0
  %260 = vmatpush2.bf16.msra.mxu0 0
  %261 = vmatprep.subr.bf16.mxu0 0
  %262 = vmatpush2.bf16.msra.mxu0 0
  %263 = vmatprep.subr.bf16.mxu0 0
  %264 = vmatpush2.bf16.msra.mxu0 0
  %265 = vmatprep.subr.bf16.mxu0 0
  %266 = vmatpush2.bf16.msra.mxu0 0
  %267 = vmatprep.subr.bf16.mxu0 0
  %268 = vmatpush2.bf16.msra.mxu0 0
  %269 = vmatprep.subr.bf16.mxu0 0
  %270 = vmatpush2.bf16.msra.mxu0 0
  %271 = vmatprep.mubr.bf16.mxu0 0
  %272 = vmatmul.mubr.bf16.gmra.mxu0 %v179
  %v273 = vpop.f32.mrf.mxu0
  %v274 = vadd.f32 %v72, %v273
  %v275 = vpop.f32.mrf.mxu0
  %v276 = vpop.f32.mrf.mxu0
  %v277 = vadd.f32 %v72, %v276
  %v278 = vpop.f32.mrf.mxu0
  %279 = vmatprep.mubr.bf16.mxu0 0
  %280 = vmatmul.mubr.bf16.gmra.mxu0 %v182
  %v281 = vpop.f32.mrf.mxu0
  %v282 = vadd.f32 %v72, %v281
  %v283 = vpop.f32.mrf.mxu0
  %v284 = vpop.f32.mrf.mxu0
  %v285 = vadd.f32 %v72, %v284
  %v286 = vpop.f32.mrf.mxu0
  %287 = vmatprep.mubr.bf16.mxu0 0
  %288 = vmatmul.mubr.bf16.gmra.mxu0 %v185
  %v289 = vpop.f32.mrf.mxu0
  %v290 = vadd.f32 %v72, %v289
  %v291 = vpop.f32.mrf.mxu0
  %v292 = vpop.f32.mrf.mxu0
  %v293 = vadd.f32 %v72, %v292
  %v294 = vpop.f32.mrf.mxu0
  %295 = vmatprep.mubr.bf16.mxu0 0
  %296 = vmatmul.mubr.bf16.gmra.mxu0 %v188
  %v297 = vpop.f32.mrf.mxu0
  %v298 = vadd.f32 %v72, %v297
  %v299 = vpop.f32.mrf.mxu0
  %v300 = vpop.f32.mrf.mxu0
  %v301 = vadd.f32 %v72, %v300
  %v302 = vpop.f32.mrf.mxu0
  %303 = vmatprep.mubr.bf16.mxu0 0
  %304 = vmatmul.mubr.bf16.gmra.mxu0 %v191
  %v305 = vpop.f32.mrf.mxu0
  %v306 = vadd.f32 %v72, %v305
  %v307 = vpop.f32.mrf.mxu0
  %v308 = vpop.f32.mrf.mxu0
  %v309 = vadd.f32 %v72, %v308
  %v310 = vpop.f32.mrf.mxu0
  %311 = vmatprep.mubr.bf16.mxu0 0
  %312 = vmatmul.mubr.bf16.gmra.mxu0 %v194
  %v313 = vpop.f32.mrf.mxu0
  %v314 = vadd.f32 %v72, %v313
  %v315 = vpop.f32.mrf.mxu0
  %v316 = vpop.f32.mrf.mxu0
  %v317 = vadd.f32 %v72, %v316
  %v318 = vpop.f32.mrf.mxu0
  %319 = vmatprep.mubr.bf16.mxu0 0
  %320 = vmatmul.mubr.bf16.gmra.mxu0 %v197
  %v321 = vpop.f32.mrf.mxu0
  %v322 = vadd.f32 %v72, %v321
  %v323 = vpop.f32.mrf.mxu0
  %v324 = vpop.f32.mrf.mxu0
  %v325 = vadd.f32 %v72, %v324
  %v326 = vpop.f32.mrf.mxu0
  %327 = vmatprep.mubr.bf16.mxu0 0
  %328 = vmatmul.mubr.bf16.gmra.mxu0 %v200
  %v329 = vpop.f32.mrf.mxu0
  %v330 = vadd.f32 %v72, %v329
  %v331 = vpop.f32.mrf.mxu0
  %v332 = vpop.f32.mrf.mxu0
  %v333 = vadd.f32 %v72, %v332
  %v334 = vpop.f32.mrf.mxu0
  %335 = vmatprep.mubr.bf16.mxu0 0
  %336 = vmatmul.mubr.bf16.gmra.mxu0 %v203
  %v337 = vpop.f32.mrf.mxu0
  %v338 = vadd.f32 %v72, %v337
  %v339 = vpop.f32.mrf.mxu0
  %v340 = vpop.f32.mrf.mxu0
  %v341 = vadd.f32 %v72, %v340
  %v342 = vpop.f32.mrf.mxu0
  %343 = vmatprep.mubr.bf16.mxu0 0
  %344 = vmatmul.mubr.bf16.gmra.mxu0 %v206
  %v345 = vpop.f32.mrf.mxu0
  %v346 = vadd.f32 %v72, %v345
  %v347 = vpop.f32.mrf.mxu0
  %v348 = vpop.f32.mrf.mxu0
  %v349 = vadd.f32 %v72, %v348
  %v350 = vpop.f32.mrf.mxu0
  %351 = vmatprep.mubr.bf16.mxu0 0
  %352 = vmatmul.mubr.bf16.gmra.mxu0 %v209
  %v353 = vpop.f32.mrf.mxu0
  %v354 = vadd.f32 %v72, %v353
  %v355 = vpop.f32.mrf.mxu0
  %v356 = vpop.f32.mrf.mxu0
  %v357 = vadd.f32 %v72, %v356
  %v358 = vpop.f32.mrf.mxu0
  %359 = vmatprep.mubr.bf16.mxu0 0
  %360 = vmatmul.mubr.bf16.gmra.mxu0 %v212
  %v361 = vpop.f32.mrf.mxu0
  %v362 = vadd.f32 %v72, %v361
  %v363 = vpop.f32.mrf.mxu0
  %v364 = vpop.f32.mrf.mxu0
  %v365 = vadd.f32 %v72, %v364
  %v366 = vpop.f32.mrf.mxu0
  %367 = vmatprep.mubr.bf16.mxu0 0
  %368 = vmatmul.mubr.bf16.gmra.mxu0 %v215
  %v369 = vpop.f32.mrf.mxu0
  %v370 = vadd.f32 %v72, %v369
  %v371 = vpop.f32.mrf.mxu0
  %v372 = vpop.f32.mrf.mxu0
  %v373 = vadd.f32 %v72, %v372
  %v374 = vpop.f32.mrf.mxu0
  %375 = vmatprep.mubr.bf16.mxu0 0
  %376 = vmatmul.mubr.bf16.gmra.mxu0 %v218
  %v377 = vpop.f32.mrf.mxu0
  %v378 = vadd.f32 %v72, %v377
  %v379 = vpop.f32.mrf.mxu0
  %v380 = vpop.f32.mrf.mxu0
  %v381 = vadd.f32 %v72, %v380
  %v382 = vpop.f32.mrf.mxu0
  %383 = vmatprep.mubr.bf16.mxu0 0
  %384 = vmatmul.mubr.bf16.gmra.mxu0 %v221
  %v385 = vpop.f32.mrf.mxu0
  %v386 = vadd.f32 %v72, %v385
  %v387 = vpop.f32.mrf.mxu0
  %v388 = vpop.f32.mrf.mxu0
  %v389 = vadd.f32 %v72, %v388
  %v390 = vpop.f32.mrf.mxu0
  %391 = vmatprep.mubr.bf16.mxu0 0
  %392 = vmatmul.mubr.bf16.gmra.mxu0 %v224
  %v393 = vpop.f32.mrf.mxu0
  %v394 = vadd.f32 %v72, %v393
  %v395 = vpop.f32.mrf.mxu0
  %v396 = vpop.f32.mrf.mxu0
  %v397 = vadd.f32 %v72, %v396
  %v398 = vpop.f32.mrf.mxu0
  %399 = vmatprep.mubr.bf16.mxu0 0
  %400 = vmatmul.mubr.bf16.gmra.mxu0 %v227
  %v401 = vpop.f32.mrf.mxu0
  %v402 = vadd.f32 %v72, %v401
  %v403 = vpop.f32.mrf.mxu0
  %v404 = vpop.f32.mrf.mxu0
  %v405 = vadd.f32 %v72, %v404
  %v406 = vpop.f32.mrf.mxu0
  %407 = vmatprep.mubr.bf16.mxu0 0
  %408 = vmatmul.mubr.bf16.gmra.mxu0 %v230
  %v409 = vpop.f32.mrf.mxu0
  %v410 = vadd.f32 %v72, %v409
  %v411 = vpop.f32.mrf.mxu0
  %v412 = vpop.f32.mrf.mxu0
  %v413 = vadd.f32 %v72, %v412
  %v414 = vpop.f32.mrf.mxu0
  %415 = vmatprep.mubr.bf16.mxu0 0
  %416 = vmatmul.mubr.bf16.gmra.mxu0 %v233
  %v417 = vpop.f32.mrf.mxu0
  %v418 = vadd.f32 %v72, %v417
  %v419 = vpop.f32.mrf.mxu0
  %v420 = vpop.f32.mrf.mxu0
  %v421 = vadd.f32 %v72, %v420
  %v422 = vpop.f32.mrf.mxu0
  %423 = vdwg.mxu0
  %v424 = vpack.c.bf16 %v277, %v274
  %v425 = vpack.c.bf16 %v285, %v282
  %v426 = vpack.c.bf16 %v293, %v290
  %v427 = vpack.c.bf16 %v301, %v298
  %v428 = vpack.c.bf16 %v309, %v306
  %v429 = vpack.c.bf16 %v317, %v314
  %v430 = vpack.c.bf16 %v325, %v322
  %v431 = vpack.c.bf16 %v333, %v330
  %v432 = vpack.c.bf16 %v341, %v338
  %v433 = vpack.c.bf16 %v349, %v346
  %v434 = vpack.c.bf16 %v357, %v354
  %v435 = vpack.c.bf16 %v365, %v362
  %v436 = vpack.c.bf16 %v373, %v370
  %v437 = vpack.c.bf16 %v381, %v378
  %v438 = vpack.c.bf16 %v389, %v386
  %v439 = vpack.c.bf16 %v397, %v394
  %v440 = vpack.c.bf16 %v405, %v402
  %v441 = vpack.c.bf16 %v413, %v410
  %v442 = vpack.c.bf16 %v421, %v418
  %v443 = vlaneseq
  %v444 = vshrl.u32 %v443, 7
  %v445 = vsub.s32 1, %v444
  %v446 = vrot.slane %v68, %v445
  %v451 = vunpack.c.l.b16 %v59
  %v452 = vunpack.c.l.b16 %v60
  %v453 = vunpack.c.l.b16 %v61
  %v454 = vunpack.c.l.b16 %v62
  %v455 = vpack.c.b16 %v452, %v451
  %v456 = vpack.c.b16 %v454, %v453
  %vm459 = vcmask 261120
  %v461 = vsel %vm459, %v424, 0
  %v464 = vsel %vm459, %v425, 0
  %v467 = vsel %vm459, %v426, 0
  %v470 = vsel %vm459, %v427, 0
  %v473 = vsel %vm459, %v428, 0
  %v476 = vsel %vm459, %v429, 0
  %v479 = vsel %vm459, %v430, 0
  %v482 = vsel %vm459, %v431, 0
  %v485 = vsel %vm459, %v432, 0
  %v488 = vsel %vm459, %v433, 0
  %v491 = vsel %vm459, %v434, 0
  %v494 = vsel %vm459, %v435, 0
  %v497 = vsel %vm459, %v436, 0
  %v500 = vsel %vm459, %v437, 0
  %v503 = vsel %vm459, %v438, 0
  %v506 = vsel %vm459, %v439, 0
  %v509 = vsel %vm459, %v440, 0
  %v512 = vsel %vm459, %v441, 0
  %v515 = vsel %vm459, %v442, 0
  %517 = vmatprep.subr.bf16.mxu0 0
  %518 = vmatpush1.bf16.msra.mxu0 0
  %519 = vmatprep.subr.bf16.mxu0 0
  %520 = vmatpush1.bf16.msra.mxu0 0
  %521 = vmatprep.subr.bf16.mxu0 0
  %522 = vmatpush1.bf16.msra.mxu0 0
  %523 = vmatprep.subr.bf16.mxu0 0
  %524 = vmatpush1.bf16.msra.mxu0 0
  %525 = vmatprep.subr.bf16.mxu0 0
  %526 = vmatpush1.bf16.msra.mxu0 0
  %527 = vmatprep.subr.bf16.mxu0 0
  %528 = vmatpush1.bf16.msra.mxu0 0
  %529 = vmatprep.subr.bf16.mxu0 0
  %530 = vmatpush1.bf16.msra.mxu0 %v456
  %531 = vmatprep.subr.bf16.mxu0 0
  %532 = vmatpush1.bf16.msra.mxu0 %v455
  %533 = vmatprep.subr.bf16.mxu0 0
  %534 = vmatpush2.bf16.msra.mxu0 0
  %535 = vmatprep.subr.bf16.mxu0 0
  %536 = vmatpush2.bf16.msra.mxu0 0
  %537 = vmatprep.subr.bf16.mxu0 0
  %538 = vmatpush2.bf16.msra.mxu0 0
  %539 = vmatprep.subr.bf16.mxu0 0
  %540 = vmatpush2.bf16.msra.mxu0 0
  %541 = vmatprep.subr.bf16.mxu0 0
  %542 = vmatpush2.bf16.msra.mxu0 0
  %543 = vmatprep.subr.bf16.mxu0 0
  %544 = vmatpush2.bf16.msra.mxu0 0
  %545 = vmatprep.subr.bf16.mxu0 0
  %546 = vmatpush2.bf16.msra.mxu0 0
  %547 = vmatprep.subr.bf16.mxu0 0
  %548 = vmatpush2.bf16.msra.mxu0 0
  %549 = vmatprep.mubr.bf16.mxu0 0
  %550 = vmatmul.mubr.bf16.gmra.mxu0 %v461
  %v551 = vpop.f32.mrf.mxu0
  %v552 = vadd.f32 %v446, %v551
  %v553 = vpop.f32.mrf.mxu0
  %v554 = vpop.f32.mrf.mxu0
  %v555 = vadd.f32 %v446, %v554
  %v556 = vpop.f32.mrf.mxu0
  %557 = vmatprep.mubr.bf16.mxu0 0
  %558 = vmatmul.mubr.bf16.gmra.mxu0 %v464
  %v559 = vpop.f32.mrf.mxu0
  %v560 = vadd.f32 %v446, %v559
  %v561 = vpop.f32.mrf.mxu0
  %v562 = vpop.f32.mrf.mxu0
  %v563 = vadd.f32 %v446, %v562
  %v564 = vpop.f32.mrf.mxu0
  %565 = vmatprep.mubr.bf16.mxu0 0
  %566 = vmatmul.mubr.bf16.gmra.mxu0 %v467
  %v567 = vpop.f32.mrf.mxu0
  %v568 = vadd.f32 %v446, %v567
  %v569 = vpop.f32.mrf.mxu0
  %v570 = vpop.f32.mrf.mxu0
  %v571 = vadd.f32 %v446, %v570
  %v572 = vpop.f32.mrf.mxu0
  %573 = vmatprep.mubr.bf16.mxu0 0
  %574 = vmatmul.mubr.bf16.gmra.mxu0 %v470
  %v575 = vpop.f32.mrf.mxu0
  %v576 = vadd.f32 %v446, %v575
  %v577 = vpop.f32.mrf.mxu0
  %v578 = vpop.f32.mrf.mxu0
  %v579 = vadd.f32 %v446, %v578
  %v580 = vpop.f32.mrf.mxu0
  %581 = vmatprep.mubr.bf16.mxu0 0
  %582 = vmatmul.mubr.bf16.gmra.mxu0 %v473
  %v583 = vpop.f32.mrf.mxu0
  %v584 = vadd.f32 %v446, %v583
  %v585 = vpop.f32.mrf.mxu0
  %v586 = vpop.f32.mrf.mxu0
  %v587 = vadd.f32 %v446, %v586
  %v588 = vpop.f32.mrf.mxu0
  %589 = vmatprep.mubr.bf16.mxu0 0
  %590 = vmatmul.mubr.bf16.gmra.mxu0 %v476
  %v591 = vpop.f32.mrf.mxu0
  %v592 = vadd.f32 %v446, %v591
  %v593 = vpop.f32.mrf.mxu0
  %v594 = vpop.f32.mrf.mxu0
  %v595 = vadd.f32 %v446, %v594
  %v596 = vpop.f32.mrf.mxu0
  %597 = vmatprep.mubr.bf16.mxu0 0
  %598 = vmatmul.mubr.bf16.gmra.mxu0 %v479
  %v599 = vpop.f32.mrf.mxu0
  %v600 = vadd.f32 %v446, %v599
  %v601 = vpop.f32.mrf.mxu0
  %v602 = vpop.f32.mrf.mxu0
  %v603 = vadd.f32 %v446, %v602
  %v604 = vpop.f32.mrf.mxu0
  %605 = vmatprep.mubr.bf16.mxu0 0
  %606 = vmatmul.mubr.bf16.gmra.mxu0 %v482
  %v607 = vpop.f32.mrf.mxu0
  %v608 = vadd.f32 %v446, %v607
  %v609 = vpop.f32.mrf.mxu0
  %v610 = vpop.f32.mrf.mxu0
  %v611 = vadd.f32 %v446, %v610
  %v612 = vpop.f32.mrf.mxu0
  %613 = vmatprep.mubr.bf16.mxu0 0
  %614 = vmatmul.mubr.bf16.gmra.mxu0 %v485
  %v615 = vpop.f32.mrf.mxu0
  %v616 = vadd.f32 %v446, %v615
  %v617 = vpop.f32.mrf.mxu0
  %v618 = vpop.f32.mrf.mxu0
  %v619 = vadd.f32 %v446, %v618
  %v620 = vpop.f32.mrf.mxu0
  %621 = vmatprep.mubr.bf16.mxu0 0
  %622 = vmatmul.mubr.bf16.gmra.mxu0 %v488
  %v623 = vpop.f32.mrf.mxu0
  %v624 = vadd.f32 %v446, %v623
  %v625 = vpop.f32.mrf.mxu0
  %v626 = vpop.f32.mrf.mxu0
  %v627 = vadd.f32 %v446, %v626
  %v628 = vpop.f32.mrf.mxu0
  %629 = vmatprep.mubr.bf16.mxu0 0
  %630 = vmatmul.mubr.bf16.gmra.mxu0 %v491
  %v631 = vpop.f32.mrf.mxu0
  %v632 = vadd.f32 %v446, %v631
  %v633 = vpop.f32.mrf.mxu0
  %v634 = vpop.f32.mrf.mxu0
  %v635 = vadd.f32 %v446, %v634
  %v636 = vpop.f32.mrf.mxu0
  %637 = vmatprep.mubr.bf16.mxu0 0
  %638 = vmatmul.mubr.bf16.gmra.mxu0 %v494
  %v639 = vpop.f32.mrf.mxu0
  %v640 = vadd.f32 %v446, %v639
  %v641 = vpop.f32.mrf.mxu0
  %v642 = vpop.f32.mrf.mxu0
  %v643 = vadd.f32 %v446, %v642
  %v644 = vpop.f32.mrf.mxu0
  %645 = vmatprep.mubr.bf16.mxu0 0
  %646 = vmatmul.mubr.bf16.gmra.mxu0 %v497
  %v647 = vpop.f32.mrf.mxu0
  %v648 = vadd.f32 %v446, %v647
  %v649 = vpop.f32.mrf.mxu0
  %v650 = vpop.f32.mrf.mxu0
  %v651 = vadd.f32 %v446, %v650
  %v652 = vpop.f32.mrf.mxu0
  %653 = vmatprep.mubr.bf16.mxu0 0
  %654 = vmatmul.mubr.bf16.gmra.mxu0 %v500
  %v655 = vpop.f32.mrf.mxu0
  %v656 = vadd.f32 %v446, %v655
  %v657 = vpop.f32.mrf.mxu0
  %v658 = vpop.f32.mrf.mxu0
  %v659 = vadd.f32 %v446, %v658
  %v660 = vpop.f32.mrf.mxu0
  %661 = vmatprep.mubr.bf16.mxu0 0
  %662 = vmatmul.mubr.bf16.gmra.mxu0 %v503
  %v663 = vpop.f32.mrf.mxu0
  %v664 = vadd.f32 %v446, %v663
  %v665 = vpop.f32.mrf.mxu0
  %v666 = vpop.f32.mrf.mxu0
  %v667 = vadd.f32 %v446, %v666
  %v668 = vpop.f32.mrf.mxu0
  %669 = vmatprep.mubr.bf16.mxu0 0
  %670 = vmatmul.mubr.bf16.gmra.mxu0 %v506
  %v671 = vpop.f32.mrf.mxu0
  %v672 = vadd.f32 %v446, %v671
  %v673 = vpop.f32.mrf.mxu0
  %v674 = vpop.f32.mrf.mxu0
  %v675 = vadd.f32 %v446, %v674
  %v676 = vpop.f32.mrf.mxu0
  %677 = vmatprep.mubr.bf16.mxu0 0
  %678 = vmatmul.mubr.bf16.gmra.mxu0 %v509
  %v679 = vpop.f32.mrf.mxu0
  %v680 = vadd.f32 %v446, %v679
  %v681 = vpop.f32.mrf.mxu0
  %v682 = vpop.f32.mrf.mxu0
  %v683 = vadd.f32 %v446, %v682
  %v684 = vpop.f32.mrf.mxu0
  %685 = vmatprep.mubr.bf16.mxu0 0
  %686 = vmatmul.mubr.bf16.gmra.mxu0 %v512
  %v687 = vpop.f32.mrf.mxu0
  %v688 = vadd.f32 %v446, %v687
  %v689 = vpop.f32.mrf.mxu0
  %v690 = vpop.f32.mrf.mxu0
  %v691 = vadd.f32 %v446, %v690
  %v692 = vpop.f32.mrf.mxu0
  %693 = vmatprep.mubr.bf16.mxu0 0
  %694 = vmatmul.mubr.bf16.gmra.mxu0 %v515
  %v695 = vpop.f32.mrf.mxu0
  %v696 = vadd.f32 %v446, %v695
  %v697 = vpop.f32.mrf.mxu0
  %v698 = vpop.f32.mrf.mxu0
  %v699 = vadd.f32 %v446, %v698
  %v700 = vpop.f32.mrf.mxu0
  %701 = vdwg.mxu0
  %v702 = vmax.f32 %v552, 0.0
  %v703 = vmax.f32 %v555, 0.0
  %v704 = vmax.f32 %v560, 0.0
  %v705 = vmax.f32 %v563, 0.0
  %v706 = vmax.f32 %v568, 0.0
  %v707 = vmax.f32 %v571, 0.0
  %v708 = vmax.f32 %v576, 0.0
  %v709 = vmax.f32 %v579, 0.0
  %v710 = vmax.f32 %v584, 0.0
  %v711 = vmax.f32 %v587, 0.0
  %v712 = vmax.f32 %v592, 0.0
  %v713 = vmax.f32 %v595, 0.0
  %v714 = vmax.f32 %v600, 0.0
  %v715 = vmax.f32 %v603, 0.0
  %v716 = vmax.f32 %v608, 0.0
  %v717 = vmax.f32 %v611, 0.0
  %v718 = vmax.f32 %v616, 0.0
  %v719 = vmax.f32 %v619, 0.0
  %v720 = vmax.f32 %v624, 0.0
  %v721 = vmax.f32 %v627, 0.0
  %v722 = vmax.f32 %v632, 0.0
  %v723 = vmax.f32 %v635, 0.0
  %v724 = vmax.f32 %v640, 0.0
  %v725 = vmax.f32 %v643, 0.0
  %v726 = vmax.f32 %v648, 0.0
  %v727 = vmax.f32 %v651, 0.0
  %v728 = vmax.f32 %v656, 0.0
  %v729 = vmax.f32 %v659, 0.0
  %v730 = vmax.f32 %v664, 0.0
  %v731 = vmax.f32 %v667, 0.0
  %v732 = vmax.f32 %v672, 0.0
  %v733 = vmax.f32 %v675, 0.0
  %v734 = vmax.f32 %v680, 0.0
  %v735 = vmax.f32 %v683, 0.0
  %v736 = vmax.f32 %v688, 0.0
  %v737 = vmax.f32 %v691, 0.0
  %v738 = vmax.f32 %v696, 0.0
  %v739 = vmax.f32 %v699, 0.0
  %v740 = vpack.c.bf16 %v703, %v702
  %v741 = vpack.c.bf16 %v705, %v704
  %v742 = vpack.c.bf16 %v707, %v706
  %v743 = vpack.c.bf16 %v709, %v708
  %v744 = vpack.c.bf16 %v711, %v710
  %v745 = vpack.c.bf16 %v713, %v712
  %v746 = vpack.c.bf16 %v715, %v714
  %v747 = vpack.c.bf16 %v717, %v716
  %v748 = vpack.c.bf16 %v719, %v718
  %v749 = vpack.c.bf16 %v721, %v720
  %v750 = vpack.c.bf16 %v723, %v722
  %v751 = vpack.c.bf16 %v725, %v724
  %v752 = vpack.c.bf16 %v727, %v726
  %v753 = vpack.c.bf16 %v729, %v728
  %v754 = vpack.c.bf16 %v731, %v730
  %v755 = vpack.c.bf16 %v733, %v732
  %v756 = vpack.c.bf16 %v735, %v734
  %v757 = vpack.c.bf16 %v737, %v736
  %v758 = vpack.c.bf16 %v739, %v738
  %v759 = vlaneseq
  %v760 = vshrl.u32 %v759, 7
  %v761 = vsub.s32 2, %v760
  %v762 = vrot.slane %v68, %v761
  %v767 = vunpack.c.l.b16 %v64
  %v768 = vunpack.c.l.b16 %v65
  %v769 = vunpack.c.l.b16 %v66
  %v770 = vunpack.c.l.b16 %v67
  %v771 = vpack.c.b16 %v768, %v767
  %v772 = vpack.c.b16 %v770, %v769
  %v776 = vsel %vm459, %v740, 0
  %v779 = vsel %vm459, %v741, 0
  %v782 = vsel %vm459, %v742, 0
  %v785 = vsel %vm459, %v743, 0
  %v788 = vsel %vm459, %v744, 0
  %v791 = vsel %vm459, %v745, 0
  %v794 = vsel %vm459, %v746, 0
  %v797 = vsel %vm459, %v747, 0
  %v800 = vsel %vm459, %v748, 0
  %v803 = vsel %vm459, %v749, 0
  %v806 = vsel %vm459, %v750, 0
  %v809 = vsel %vm459, %v751, 0
  %v812 = vsel %vm459, %v752, 0
  %v815 = vsel %vm459, %v753, 0
  %v818 = vsel %vm459, %v754, 0
  %v821 = vsel %vm459, %v755, 0
  %v824 = vsel %vm459, %v756, 0
  %v827 = vsel %vm459, %v757, 0
  %v830 = vsel %vm459, %v758, 0
  %832 = vmatprep.subr.bf16.mxu0 0
  %833 = vmatpush1.bf16.msra.mxu0 0
  %834 = vmatprep.subr.bf16.mxu0 0
  %835 = vmatpush1.bf16.msra.mxu0 0
  %836 = vmatprep.subr.bf16.mxu0 0
  %837 = vmatpush1.bf16.msra.mxu0 0
  %838 = vmatprep.subr.bf16.mxu0 0
  %839 = vmatpush1.bf16.msra.mxu0 0
  %840 = vmatprep.subr.bf16.mxu0 0
  %841 = vmatpush1.bf16.msra.mxu0 0
  %842 = vmatprep.subr.bf16.mxu0 0
  %843 = vmatpush1.bf16.msra.mxu0 0
  %844 = vmatprep.subr.bf16.mxu0 0
  %845 = vmatpush1.bf16.msra.mxu0 %v772
  %846 = vmatprep.subr.bf16.mxu0 0
  %847 = vmatpush1.bf16.msra.mxu0 %v771
  %848 = vmatprep.subr.bf16.mxu0 0
  %849 = vmatpush2.bf16.msra.mxu0 0
  %850 = vmatprep.subr.bf16.mxu0 0
  %851 = vmatpush2.bf16.msra.mxu0 0
  %852 = vmatprep.subr.bf16.mxu0 0
  %853 = vmatpush2.bf16.msra.mxu0 0
  %854 = vmatprep.subr.bf16.mxu0 0
  %855 = vmatpush2.bf16.msra.mxu0 0
  %856 = vmatprep.subr.bf16.mxu0 0
  %857 = vmatpush2.bf16.msra.mxu0 0
  %858 = vmatprep.subr.bf16.mxu0 0
  %859 = vmatpush2.bf16.msra.mxu0 0
  %860 = vmatprep.subr.bf16.mxu0 0
  %861 = vmatpush2.bf16.msra.mxu0 0
  %862 = vmatprep.subr.bf16.mxu0 0
  %863 = vmatpush2.bf16.msra.mxu0 0
  %864 = vmatprep.mubr.bf16.mxu0 0
  %865 = vmatmul.mubr.bf16.gmra.mxu0 %v776
  %v866 = vpop.f32.mrf.mxu0
  %v867 = vadd.f32 %v762, %v866
  %v868 = vpop.f32.mrf.mxu0
  %v869 = vpop.f32.mrf.mxu0
  %v870 = vadd.f32 %v762, %v869
  %v871 = vpop.f32.mrf.mxu0
  %872 = vmatprep.mubr.bf16.mxu0 0
  %873 = vmatmul.mubr.bf16.gmra.mxu0 %v779
  %v874 = vpop.f32.mrf.mxu0
  %v875 = vadd.f32 %v762, %v874
  %v876 = vpop.f32.mrf.mxu0
  %v877 = vpop.f32.mrf.mxu0
  %v878 = vadd.f32 %v762, %v877
  %v879 = vpop.f32.mrf.mxu0
  %880 = vmatprep.mubr.bf16.mxu0 0
  %881 = vmatmul.mubr.bf16.gmra.mxu0 %v782
  %v882 = vpop.f32.mrf.mxu0
  %v883 = vadd.f32 %v762, %v882
  %v884 = vpop.f32.mrf.mxu0
  %v885 = vpop.f32.mrf.mxu0
  %v886 = vadd.f32 %v762, %v885
  %v887 = vpop.f32.mrf.mxu0
  %888 = vmatprep.mubr.bf16.mxu0 0
  %889 = vmatmul.mubr.bf16.gmra.mxu0 %v785
  %v890 = vpop.f32.mrf.mxu0
  %v891 = vadd.f32 %v762, %v890
  %v892 = vpop.f32.mrf.mxu0
  %v893 = vpop.f32.mrf.mxu0
  %v894 = vadd.f32 %v762, %v893
  %v895 = vpop.f32.mrf.mxu0
  %896 = vmatprep.mubr.bf16.mxu0 0
  %897 = vmatmul.mubr.bf16.gmra.mxu0 %v788
  %v898 = vpop.f32.mrf.mxu0
  %v899 = vadd.f32 %v762, %v898
  %v900 = vpop.f32.mrf.mxu0
  %v901 = vpop.f32.mrf.mxu0
  %v902 = vadd.f32 %v762, %v901
  %v903 = vpop.f32.mrf.mxu0
  %904 = vmatprep.mubr.bf16.mxu0 0
  %905 = vmatmul.mubr.bf16.gmra.mxu0 %v791
  %v906 = vpop.f32.mrf.mxu0
  %v907 = vadd.f32 %v762, %v906
  %v908 = vpop.f32.mrf.mxu0
  %v909 = vpop.f32.mrf.mxu0
  %v910 = vadd.f32 %v762, %v909
  %v911 = vpop.f32.mrf.mxu0
  %912 = vmatprep.mubr.bf16.mxu0 0
  %913 = vmatmul.mubr.bf16.gmra.mxu0 %v794
  %v914 = vpop.f32.mrf.mxu0
  %v915 = vadd.f32 %v762, %v914
  %v916 = vpop.f32.mrf.mxu0
  %v917 = vpop.f32.mrf.mxu0
  %v918 = vadd.f32 %v762, %v917
  %v919 = vpop.f32.mrf.mxu0
  %920 = vmatprep.mubr.bf16.mxu0 0
  %921 = vmatmul.mubr.bf16.gmra.mxu0 %v797
  %v922 = vpop.f32.mrf.mxu0
  %v923 = vadd.f32 %v762, %v922
  %v924 = vpop.f32.mrf.mxu0
  %v925 = vpop.f32.mrf.mxu0
  %v926 = vadd.f32 %v762, %v925
  %v927 = vpop.f32.mrf.mxu0
  %928 = vmatprep.mubr.bf16.mxu0 0
  %929 = vmatmul.mubr.bf16.gmra.mxu0 %v800
  %v930 = vpop.f32.mrf.mxu0
  %v931 = vadd.f32 %v762, %v930
  %v932 = vpop.f32.mrf.mxu0
  %v933 = vpop.f32.mrf.mxu0
  %v934 = vadd.f32 %v762, %v933
  %v935 = vpop.f32.mrf.mxu0
  %936 = vmatprep.mubr.bf16.mxu0 0
  %937 = vmatmul.mubr.bf16.gmra.mxu0 %v803
  %v938 = vpop.f32.mrf.mxu0
  %v939 = vadd.f32 %v762, %v938
  %v940 = vpop.f32.mrf.mxu0
  %v941 = vpop.f32.mrf.mxu0
  %v942 = vadd.f32 %v762, %v941
  %v943 = vpop.f32.mrf.mxu0
  %944 = vmatprep.mubr.bf16.mxu0 0
  %945 = vmatmul.mubr.bf16.gmra.mxu0 %v806
  %v946 = vpop.f32.mrf.mxu0
  %v947 = vadd.f32 %v762, %v946
  %v948 = vpop.f32.mrf.mxu0
  %v949 = vpop.f32.mrf.mxu0
  %v950 = vadd.f32 %v762, %v949
  %v951 = vpop.f32.mrf.mxu0
  %952 = vmatprep.mubr.bf16.mxu0 0
  %953 = vmatmul.mubr.bf16.gmra.mxu0 %v809
  %v954 = vpop.f32.mrf.mxu0
  %v955 = vadd.f32 %v762, %v954
  %v956 = vpop.f32.mrf.mxu0
  %v957 = vpop.f32.mrf.mxu0
  %v958 = vadd.f32 %v762, %v957
  %v959 = vpop.f32.mrf.mxu0
  %960 = vmatprep.mubr.bf16.mxu0 0
  %961 = vmatmul.mubr.bf16.gmra.mxu0 %v812
  %v962 = vpop.f32.mrf.mxu0
  %v963 = vadd.f32 %v762, %v962
  %v964 = vpop.f32.mrf.mxu0
  %v965 = vpop.f32.mrf.mxu0
  %v966 = vadd.f32 %v762, %v965
  %v967 = vpop.f32.mrf.mxu0
  %968 = vmatprep.mubr.bf16.mxu0 0
  %969 = vmatmul.mubr.bf16.gmra.mxu0 %v815
  %v970 = vpop.f32.mrf.mxu0
  %v971 = vadd.f32 %v762, %v970
  %v972 = vpop.f32.mrf.mxu0
  %v973 = vpop.f32.mrf.mxu0
  %v974 = vadd.f32 %v762, %v973
  %v975 = vpop.f32.mrf.mxu0
  %976 = vmatprep.mubr.bf16.mxu0 0
  %977 = vmatmul.mubr.bf16.gmra.mxu0 %v818
  %v978 = vpop.f32.mrf.mxu0
  %v979 = vadd.f32 %v762, %v978
  %v980 = vpop.f32.mrf.mxu0
  %v981 = vpop.f32.mrf.mxu0
  %v982 = vadd.f32 %v762, %v981
  %v983 = vpop.f32.mrf.mxu0
  %984 = vmatprep.mubr.bf16.mxu0 0
  %985 = vmatmul.mubr.bf16.gmra.mxu0 %v821
  %v986 = vpop.f32.mrf.mxu0
  %v987 = vadd.f32 %v762, %v986
  %v988 = vpop.f32.mrf.mxu0
  %v989 = vpop.f32.mrf.mxu0
  %v990 = vadd.f32 %v762, %v989
  %v991 = vpop.f32.mrf.mxu0
  %992 = vmatprep.mubr.bf16.mxu0 0
  %993 = vmatmul.mubr.bf16.gmra.mxu0 %v824
  %v994 = vpop.f32.mrf.mxu0
  %v995 = vadd.f32 %v762, %v994
  %v996 = vpop.f32.mrf.mxu0
  %v997 = vpop.f32.mrf.mxu0
  %v998 = vadd.f32 %v762, %v997
  %v999 = vpop.f32.mrf.mxu0
  %1000 = vmatprep.mubr.bf16.mxu0 0
  %1001 = vmatmul.mubr.bf16.gmra.mxu0 %v827
  %v1002 = vpop.f32.mrf.mxu0
  %v1003 = vadd.f32 %v762, %v1002
  %v1004 = vpop.f32.mrf.mxu0
  %v1005 = vpop.f32.mrf.mxu0
  %v1006 = vadd.f32 %v762, %v1005
  %v1007 = vpop.f32.mrf.mxu0
  %1008 = vmatprep.mubr.bf16.mxu0 0
  %1009 = vmatmul.mubr.bf16.gmra.mxu0 %v830
  %v1010 = vpop.f32.mrf.mxu0
  %v1011 = vadd.f32 %v762, %v1010
  %v1012 = vpop.f32.mrf.mxu0
  %v1013 = vpop.f32.mrf.mxu0
  %v1014 = vadd.f32 %v762, %v1013
  %v1015 = vpop.f32.mrf.mxu0
  %1016 = vdwg.mxu0
  %v1017 = vmax.f32 %v867, 0.0
  %v1018 = vmax.f32 %v870, 0.0
  %v1019 = vmax.f32 %v875, 0.0
  %v1020 = vmax.f32 %v878, 0.0
  %v1021 = vmax.f32 %v883, 0.0
  %v1022 = vmax.f32 %v886, 0.0
  %v1023 = vmax.f32 %v891, 0.0
  %v1024 = vmax.f32 %v894, 0.0
  %v1025 = vmax.f32 %v899, 0.0
  %v1026 = vmax.f32 %v902, 0.0
  %v1027 = vmax.f32 %v907, 0.0
  %v1028 = vmax.f32 %v910, 0.0
  %v1029 = vmax.f32 %v915, 0.0
  %v1030 = vmax.f32 %v918, 0.0
  %v1031 = vmax.f32 %v923, 0.0
  %v1032 = vmax.f32 %v926, 0.0
  %v1033 = vmax.f32 %v931, 0.0
  %v1034 = vmax.f32 %v934, 0.0
  %v1035 = vmax.f32 %v939, 0.0
  %v1036 = vmax.f32 %v942, 0.0
  %v1037 = vmax.f32 %v947, 0.0
  %v1038 = vmax.f32 %v950, 0.0
  %v1039 = vmax.f32 %v955, 0.0
  %v1040 = vmax.f32 %v958, 0.0
  %v1041 = vmax.f32 %v963, 0.0
  %v1042 = vmax.f32 %v966, 0.0
  %v1043 = vmax.f32 %v971, 0.0
  %v1044 = vmax.f32 %v974, 0.0
  %v1045 = vmax.f32 %v979, 0.0
  %v1046 = vmax.f32 %v982, 0.0
  %v1047 = vmax.f32 %v987, 0.0
  %v1048 = vmax.f32 %v990, 0.0
  %v1049 = vmax.f32 %v995, 0.0
  %v1050 = vmax.f32 %v998, 0.0
  %v1051 = vmax.f32 %v1003, 0.0
  %v1052 = vmax.f32 %v1006, 0.0
  %v1053 = vmax.f32 %v1011, 0.0
  %v1054 = vmax.f32 %v1014, 0.0
  %1056 = vset.pattern.permute.xlu0 0
  %1057 = vperm.xlu0 %1056, %v68
  %v1058 = vpop.permute.xlu0 %1057
  %v1059 = vrot.slane %v68, 3
  %v1060 = vrot.slane %v1058, 4
  %v1062 = vsel %vm459, %v1059, 0
  %v1065 = vsel %vm459, %v1017, 0
  %v1068 = vsel %vm459, %v1018, 0
  %v1071 = vsel %vm459, %v1019, 0
  %v1074 = vsel %vm459, %v1020, 0
  %v1077 = vsel %vm459, %v1021, 0
  %v1080 = vsel %vm459, %v1022, 0
  %v1083 = vsel %vm459, %v1023, 0
  %v1086 = vsel %vm459, %v1024, 0
  %v1089 = vsel %vm459, %v1025, 0
  %v1092 = vsel %vm459, %v1026, 0
  %v1095 = vsel %vm459, %v1027, 0
  %v1098 = vsel %vm459, %v1028, 0
  %v1101 = vsel %vm459, %v1029, 0
  %v1104 = vsel %vm459, %v1030, 0
  %v1107 = vsel %vm459, %v1031, 0
  %v1110 = vsel %vm459, %v1032, 0
  %v1113 = vsel %vm459, %v1033, 0
  %v1116 = vsel %vm459, %v1034, 0
  %v1119 = vsel %vm459, %v1035, 0
  %v1122 = vsel %vm459, %v1036, 0
  %v1125 = vsel %vm459, %v1037, 0
  %v1128 = vsel %vm459, %v1038, 0
  %v1131 = vsel %vm459, %v1039, 0
  %v1134 = vsel %vm459, %v1040, 0
  %v1137 = vsel %vm459, %v1041, 0
  %v1140 = vsel %vm459, %v1042, 0
  %v1143 = vsel %vm459, %v1043, 0
  %v1146 = vsel %vm459, %v1044, 0
  %v1149 = vsel %vm459, %v1045, 0
  %v1152 = vsel %vm459, %v1046, 0
  %v1155 = vsel %vm459, %v1047, 0
  %v1158 = vsel %vm459, %v1048, 0
  %v1161 = vsel %vm459, %v1049, 0
  %v1164 = vsel %vm459, %v1050, 0
  %v1167 = vsel %vm459, %v1051, 0
  %v1170 = vsel %vm459, %v1052, 0
  %v1173 = vsel %vm459, %v1053, 0
  %v1176 = vsel %vm459, %v1054, 0
  %1178 = vmatprep.subr.mxu0 0.0
  %1179 = vmatpush1.xpose.msra.mxu0 %v1110
  %1180 = vmatprep.subr.mxu0 0.0
  %1181 = vmatpush1.xpose.msra.mxu0 %v1107
  %1182 = vmatprep.subr.mxu0 0.0
  %1183 = vmatpush1.xpose.msra.mxu0 %v1104
  %1184 = vmatprep.subr.mxu0 0.0
  %1185 = vmatpush1.xpose.msra.mxu0 %v1101
  %1186 = vmatprep.subr.mxu0 0.0
  %1187 = vmatpush1.xpose.msra.mxu0 %v1098
  %1188 = vmatprep.subr.mxu0 0.0
  %1189 = vmatpush1.xpose.msra.mxu0 %v1095
  %1190 = vmatprep.subr.mxu0 0.0
  %1191 = vmatpush1.xpose.msra.mxu0 %v1092
  %1192 = vmatprep.subr.mxu0 0.0
  %1193 = vmatpush1.xpose.msra.mxu0 %v1089
  %1194 = vmatprep.subr.mxu0 0.0
  %1195 = vmatpush1.xpose.msra.mxu0 %v1086
  %1196 = vmatprep.subr.mxu0 0.0
  %1197 = vmatpush1.xpose.msra.mxu0 %v1083
  %1198 = vmatprep.subr.mxu0 0.0
  %1199 = vmatpush1.xpose.msra.mxu0 %v1080
  %1200 = vmatprep.subr.mxu0 0.0
  %1201 = vmatpush1.xpose.msra.mxu0 %v1077
  %1202 = vmatprep.subr.mxu0 0.0
  %1203 = vmatpush1.xpose.msra.mxu0 %v1074
  %1204 = vmatprep.subr.mxu0 0.0
  %1205 = vmatpush1.xpose.msra.mxu0 %v1071
  %1206 = vmatprep.subr.mxu0 0.0
  %1207 = vmatpush1.xpose.msra.mxu0 %v1068
  %1208 = vmatprep.subr.mxu0 0.0
  %1209 = vmatpush1.xpose.msra.mxu0 %v1065
  %1210 = vmatprep.subr.mxu0 0.0
  %1211 = vmatpush2.xpose.msra.mxu0 %v1158
  %1212 = vmatprep.subr.mxu0 0.0
  %1213 = vmatpush2.xpose.msra.mxu0 %v1155
  %1214 = vmatprep.subr.mxu0 0.0
  %1215 = vmatpush2.xpose.msra.mxu0 %v1152
  %1216 = vmatprep.subr.mxu0 0.0
  %1217 = vmatpush2.xpose.msra.mxu0 %v1149
  %1218 = vmatprep.subr.mxu0 0.0
  %1219 = vmatpush2.xpose.msra.mxu0 %v1146
  %1220 = vmatprep.subr.mxu0 0.0
  %1221 = vmatpush2.xpose.msra.mxu0 %v1143
  %1222 = vmatprep.subr.mxu0 0.0
  %1223 = vmatpush2.xpose.msra.mxu0 %v1140
  %1224 = vmatprep.subr.mxu0 0.0
  %1225 = vmatpush2.xpose.msra.mxu0 %v1137
  %1226 = vmatprep.subr.mxu0 0.0
  %1227 = vmatpush2.xpose.msra.mxu0 %v1134
  %1228 = vmatprep.subr.mxu0 0.0
  %1229 = vmatpush2.xpose.msra.mxu0 %v1131
  %1230 = vmatprep.subr.mxu0 0.0
  %1231 = vmatpush2.xpose.msra.mxu0 %v1128
  %1232 = vmatprep.subr.mxu0 0.0
  %1233 = vmatpush2.xpose.msra.mxu0 %v1125
  %1234 = vmatprep.subr.mxu0 0.0
  %1235 = vmatpush2.xpose.msra.mxu0 %v1122
  %1236 = vmatprep.subr.mxu0 0.0
  %1237 = vmatpush2.xpose.msra.mxu0 %v1119
  %1238 = vmatprep.subr.mxu0 0.0
  %1239 = vmatpush2.xpose.msra.mxu0 %v1116
  %1240 = vmatprep.subr.mxu0 0.0
  %1241 = vmatpush2.xpose.msra.mxu0 %v1113
  %1242 = vmatprep.mubr.f32.mxu0 0.0
  %1243 = vmatmul.mubr.f32.gmra.mxu0 %v1062
  %v1244 = vpop.f32.mrf.mxu0
  %v1245 = vadd.f32 %v1060, %v1244
  %v1246 = vpop.f32.mrf.mxu0
  %v1247 = vadd.f32 %v1060, %v1246
  %1248 = vdwg.mxu0
  %1249 = vmatprep.subr.mxu0 0.0
  %1250 = vmatpush1.xpose.msra.mxu0 0.0
  %1251 = vmatprep.subr.mxu0 0.0
  %1252 = vmatpush1.xpose.msra.mxu0 0.0
  %1253 = vmatprep.subr.mxu0 0.0
  %1254 = vmatpush1.xpose.msra.mxu0 0.0
  %1255 = vmatprep.subr.mxu0 0.0
  %1256 = vmatpush1.xpose.msra.mxu0 0.0
  %1257 = vmatprep.subr.mxu0 0.0
  %1258 = vmatpush1.xpose.msra.mxu0 0.0
  %1259 = vmatprep.subr.mxu0 0.0
  %1260 = vmatpush1.xpose.msra.mxu0 0.0
  %1261 = vmatprep.subr.mxu0 0.0
  %1262 = vmatpush1.xpose.msra.mxu0 0.0
  %1263 = vmatprep.subr.mxu0 0.0
  %1264 = vmatpush1.xpose.msra.mxu0 0.0
  %1265 = vmatprep.subr.mxu0 0.0
  %1266 = vmatpush1.xpose.msra.mxu0 0.0
  %1267 = vmatprep.subr.mxu0 0.0
  %1268 = vmatpush1.xpose.msra.mxu0 0.0
  %1269 = vmatprep.subr.mxu0 0.0
  %1270 = vmatpush1.xpose.msra.mxu0 %v1176
  %1271 = vmatprep.subr.mxu0 0.0
  %1272 = vmatpush1.xpose.msra.mxu0 %v1173
  %1273 = vmatprep.subr.mxu0 0.0
  %1274 = vmatpush1.xpose.msra.mxu0 %v1170
  %1275 = vmatprep.subr.mxu0 0.0
  %1276 = vmatpush1.xpose.msra.mxu0 %v1167
  %1277 = vmatprep.subr.mxu0 0.0
  %1278 = vmatpush1.xpose.msra.mxu0 %v1164
  %1279 = vmatprep.subr.mxu0 0.0
  %1280 = vmatpush1.xpose.msra.mxu0 %v1161
  %1281 = vmatprep.subr.mxu0 0.0
  %1282 = vmatpush2.xpose.msra.mxu0 0.0
  %1283 = vmatprep.subr.mxu0 0.0
  %1284 = vmatpush2.xpose.msra.mxu0 0.0
  %1285 = vmatprep.subr.mxu0 0.0
  %1286 = vmatpush2.xpose.msra.mxu0 0.0
  %1287 = vmatprep.subr.mxu0 0.0
  %1288 = vmatpush2.xpose.msra.mxu0 0.0
  %1289 = vmatprep.subr.mxu0 0.0
  %1290 = vmatpush2.xpose.msra.mxu0 0.0
  %1291 = vmatprep.subr.mxu0 0.0
  %1292 = vmatpush2.xpose.msra.mxu0 0.0
  %1293 = vmatprep.subr.mxu0 0.0
  %1294 = vmatpush2.xpose.msra.mxu0 0.0
  %1295 = vmatprep.subr.mxu0 0.0
  %1296 = vmatpush2.xpose.msra.mxu0 0.0
  %1297 = vmatprep.subr.mxu0 0.0
  %1298 = vmatpush2.xpose.msra.mxu0 0.0
  %1299 = vmatprep.subr.mxu0 0.0
  %1300 = vmatpush2.xpose.msra.mxu0 0.0
  %1301 = vmatprep.subr.mxu0 0.0
  %1302 = vmatpush2.xpose.msra.mxu0 0.0
  %1303 = vmatprep.subr.mxu0 0.0
  %1304 = vmatpush2.xpose.msra.mxu0 0.0
  %1305 = vmatprep.subr.mxu0 0.0
  %1306 = vmatpush2.xpose.msra.mxu0 0.0
  %1307 = vmatprep.subr.mxu0 0.0
  %1308 = vmatpush2.xpose.msra.mxu0 0.0
  %1309 = vmatprep.subr.mxu0 0.0
  %1310 = vmatpush2.xpose.msra.mxu0 0.0
  %1311 = vmatprep.subr.mxu0 0.0
  %1312 = vmatpush2.xpose.msra.mxu0 0.0
  %1313 = vmatprep.mubr.f32.mxu0 0.0
  %1314 = vmatmul.mubr.f32.gmra.mxu0 %v1062
  %v1315 = vpop.f32.mrf.mxu0
  %v1316 = vadd.f32 %v1060, %v1315
  %v1317 = vpop.f32.mrf.mxu0
  %1318 = vdwg.mxu0
  %v1319 = vxor.u32 %v1245, 2147483648
  %v1320 = vxor.u32 %v1247, 2147483648
  %v1321 = vxor.u32 %v1316, 2147483648
  %v1322 = vmul.f32 %v1319, 1.442695
  %v1323 = vpow.pop %v1322
  %v1324 = vmul.f32 %v1320, 1.442695
  %v1325 = vpow.pop %v1324
  %v1326 = vmul.f32 %v1321, 1.442695
  %v1327 = vpow.pop %v1326
  %v1328 = vadd.f32 %v1323, 1.0
  %v1329 = vadd.f32 %v1325, 1.0
  %v1330 = vadd.f32 %v1327, 1.0
  %v1331 = vrcp.pop %v1328
  %v1332 = vmul.f32 1.0, %v1331
  %v1333 = vrcp.pop %v1329
  %v1334 = vmul.f32 1.0, %v1333
  %v1335 = vrcp.pop %v1330
  %v1336 = vmul.f32 1.0, %v1335
  %v1340 = vcombine.low %v1332, %v1334
  %v1342 = vunpack.c.l.s4 1966171168
  %v1343 = vunpack.c.0.s8 %v1342
  %v1344 = vlaneseq
  %v1345 = vshrl.u32 %v1344, 7
  %v1346 = vsub.s32 %v1343, %v1345
  %v1347 = vrot.slane %v1340, %v1346
  %v1349 = vunpack.c.l.s4 1966171168
  %v1350 = vunpack.c.0.s8 %v1349
  %v1351 = vlaneseq
  %v1352 = vshrl.u32 %v1351, 7
  %v1353 = vsub.s32 %v1350, %v1352
  %v1354 = vrot.slane %v1336, %v1353
  %v1355 = vcombine.low %v1347, %v1354
  %v1357 = vunpack.c.l.s4 1966171168
  %v1358 = vunpack.c.0.s8 %v1357
  %v1359 = vlaneseq
  %v1360 = vshrl.u32 %v1359, 7
  %v1361 = vsub.s32 %v1358, %v1360
  %v1362 = vrot.slane %v1355, %v1361
  %v1364 = vlaneseq
  %vm1365 = vcmp.ge.s32.totalorder %v1364, 0
  %vm1366 = vcmp.lt.s32.totalorder %v1364, 304
  %vm1367 = vmand %vm1365, %vm1366
  %1368 = vst.msk [vmem:[%s4] sm:$0x7] %vm1367, %v1362
  // Predicated region
  $region18: #{_shield_forward_packed.1} parent=0 // pred_check
    _
  $region19: #{_shield_forward_packed.1} parent=0 // pred_check_branch
    %1370 = sbr.rel (0) target = $region21
  $region20: #{_shield_forward_packed.1} parent=0 // pred_region
    _
  $region21: #{_shield_forward_packed.1} parent=0 // pred_fallthru
    _
  // Predicated region
  $region22: #{_shield_forward_packed.1} parent=0 // pred_check
    _
  $region23: #{_shield_forward_packed.1} parent=0 // pred_check_branch
    %1372 = sbr.rel (0) target = $region25
  $region24: #{_shield_forward_packed.1} parent=0 // pred_region
    _
  $region25: #{_shield_forward_packed.1} parent=0 // pred_fallthru
    _

</llo_original>
